<compile_context>
chip_gen: v7x
topology: tpu7x:2x2x1
jax: 0.10.0
libtpu: 0.0.40
codegen_flags: <defaults>
</compile_context>

<pallas_src>
import functools

import jax
import jax.numpy as jnp
from jax import lax
from jax.experimental import pallas as pl
from jax.experimental.pallas import tpu as pltpu


def _round_up(x, m):
    return ((x + m - 1) // m) * m


def _row_granularity(*dtypes):
    # second-to-minor tiling granularity: f32 -> 8, bf16/f16 -> 16, int8 -> 32
    g = 8
    for dt in dtypes:
        g = max(g, 32 // max(1, jnp.dtype(dt).itemsize))
    return g


def _row_tiling(rows, cols, *, gran, max_block_bytes, min_blocks=2):
    """Pick (tile_rows, num_blocks, needs_mask) for a (rows, cols) lane-dense slab."""
    if rows <= gran:
        return rows, 1, False                       # full-extent single block
    bytes_per_row = cols * 4                        # budget at f32 width
    max_tile_rows = max(gran, (max_block_bytes // bytes_per_row) // gran * gran)
    # >= 2 blocks so v7x's second TensorCore gets work (no effect on v5e/v6e).
    tile_rows = min(max_tile_rows, _round_up(pl.cdiv(rows, min_blocks), gran))
    num_blocks = pl.cdiv(rows, tile_rows)
    needs_mask = (rows % tile_rows) != 0            # ragged last block
    return tile_rows, num_blocks, needs_mask


# ----------------------------------------------------------------------------
# Kernel 1: masked absolute error + per-block partial sums (HBM-bound hot path)
# ----------------------------------------------------------------------------
def _masked_ae_kernel(gt_ref, pred_ref, *out_refs, total_rows, tile_rows,
                      needs_mask, with_pointwise):
    gt = gt_ref[...].astype(jnp.float32)            # in-kernel upcast (bf16-friendly)
    pred = pred_ref[...].astype(jnp.float32)
    mask = (gt > 0.0).astype(jnp.float32)           # == nearest-resampled gt mask
    ae = jnp.abs(gt - pred) * mask                  # loss_weight == 1
    if needs_mask:                                  # ragged last grid block: drop
        valid = total_rows - pl.program_id(0) * tile_rows   # out-of-bounds garbage
        in_bounds = lax.broadcasted_iota(jnp.int32, ae.shape, 0) < valid
        ae = jnp.where(in_bounds, ae, 0.0)
        mask = jnp.where(in_bounds, mask, 0.0)
    if with_pointwise:
        ae_ref, psum_ref = out_refs
        ae_ref[...] = ae.astype(ae_ref.dtype)
    else:
        (psum_ref,) = out_refs
    # Per-block partials in SMEM (no carried state -> grid axis safely "parallel").
    psum_ref[0, 0] = jnp.sum(ae)
    psum_ref[0, 1] = jnp.sum(mask)


def _masked_ae_2d(gt2, pred2, *, return_pointwise, out_dtype=None,
                  max_block_bytes=2 * 1024 * 1024):
    """gt2, pred2: (rows, cols) slabs, cols = lane axis.  Returns (ae2|None, sA, sM)."""
    assert gt2.shape == pred2.shape
    rows, cols = gt2.shape
    out_dtype = pred2.dtype if out_dtype is None else out_dtype
    gran = _row_granularity(gt2.dtype, pred2.dtype, out_dtype)
    tile_rows, num_blocks, needs_mask = _row_tiling(
        rows, cols, gran=gran, max_block_bytes=max_block_bytes)

    data_spec = pl.BlockSpec((tile_rows, cols), lambda i: (i, 0))
    psum_spec = pl.BlockSpec((1, 2), lambda i: (i, 0),
                             memory_space=pltpu.MemorySpace.SMEM)
    psum_shape = jax.ShapeDtypeStruct((num_blocks, 2), jnp.float32)

    kernel = functools.partial(_masked_ae_kernel, total_rows=rows,
                               tile_rows=tile_rows, needs_mask=needs_mask,
                               with_pointwise=return_pointwise)
    compiler_params = pltpu.CompilerParams(
        dimension_semantics=("parallel",),           # race-free: per-block outputs only
        vmem_limit_bytes=32 * 1024 * 1024)           # fits v5e/v6e/v7x scoped VMEM

    if return_pointwise:
        out_shape = (jax.ShapeDtypeStruct((rows, cols), out_dtype), psum_shape)
        out_specs = [data_spec, psum_spec]
    else:
        out_shape = (psum_shape,)
        out_specs = [psum_spec]

    outs = pl.pallas_call(
        kernel,
        out_shape=out_shape,
        grid_spec=pltpu.PrefetchScalarGridSpec(
            num_scalar_prefetch=0, grid=(num_blocks,),
            in_specs=[data_spec, data_spec], out_specs=out_specs),
        compiler_params=compiler_params,
    )(gt2, pred2)

    if return_pointwise:
        ae2, psum = outs
    else:
        (psum,) = outs
        ae2 = None
    sums = jnp.sum(psum, axis=0)
    return ae2, sums[0], sums[1]


def masked_ae_nchw(gt_res, pred, *, return_pointwise=True,
                   lanes_options=(512, 256, 128)):
    """gt_res, pred: (N, C, Hp, Wp), same shape.  Returns (ae|None, sum_ae, sum_mask)."""
    N, C, Hp, Wp = pred.shape
    rows_nat = N * C * Hp

    if Wp % 128 == 0:
        # Lane-dense natural layout: zero-copy reshape in, zero-copy reshape out.
        ae2, s_ae, s_mask = _masked_ae_2d(
            gt_res.reshape(rows_nat, Wp), pred.reshape(rows_nat, Wp),
            return_pointwise=return_pointwise, out_dtype=pred.dtype)
        ae = ae2.reshape(N, C, Hp, Wp) if return_pointwise else None
        return ae, s_ae, s_mask

    # Fallback: repack the flat volume lane-dense (free reshape whenever numel divides).
    t = rows_nat * Wp
    lanes = next((l for l in lanes_options if t % l == 0), None)
    if lanes is not None:
        gt2 = gt_res.reshape(t // lanes, lanes)
        pred2 = pred.reshape(t // lanes, lanes)
        pad = 0
    else:
        # TODO(synk): rare pad copy (numel has no factor of 128); could also be removed
        #             by handling a ragged lane tail in-kernel.
        lanes = lanes_options[-1]
        pad = _round_up(t, lanes) - t
        gt2 = jnp.pad(gt_res.reshape(-1), (0, pad)).reshape(-1, lanes)
        pred2 = jnp.pad(pred.reshape(-1), (0, pad)).reshape(-1, lanes)

    ae2, s_ae, s_mask = _masked_ae_2d(gt2, pred2, return_pointwise=return_pointwise,
                                      out_dtype=pred.dtype)
    if not return_pointwise:
        return None, s_ae, s_mask
    if pad == 0:
        ae = ae2.reshape(N, C, Hp, Wp)               # free bitcast
    else:
        ae = ae2.reshape(-1)[:t].reshape(N, C, Hp, Wp)
    return ae, s_ae, s_mask


# ----------------------------------------------------------------------------
# Kernel 2: L2 regularization  sum(p * p) / 2   (one call per param, no concat)
# ----------------------------------------------------------------------------
def _reg_kernel(p_ref, psum_ref, *, total_rows, tile_rows, needs_mask):
    v = p_ref[...].astype(jnp.float32)
    if needs_mask:
        valid = total_rows - pl.program_id(0) * tile_rows
        in_bounds = lax.broadcasted_iota(jnp.int32, v.shape, 0) < valid
        v = jnp.where(in_bounds, v, 0.0)
    psum_ref[0, 0] = 0.5 * jnp.sum(v * v)


def _param_half_sq_sum(p, *, max_block_bytes=4 * 1024 * 1024,
                       lanes_options=(512, 256, 128)):
    t = p.size
    lanes = next((l for l in lanes_options if t % l == 0), None)
    if lanes is not None:
        p2 = p.reshape(t // lanes, lanes)            # copy-free lane-dense view
    elif t <= (1 << 18):
        p2 = p.reshape(1, t)                         # small param: one full-extent row
    else:
        # TODO(synk): rare pad copy for a large param whose numel has no 128 factor.
        pad = _round_up(t, 512) - t
        p2 = jnp.pad(p.reshape(-1), (0, pad)).reshape(-1, 512)
    rows, cols = p2.shape
    gran = _row_granularity(p2.dtype)
    tile_rows, num_blocks, needs_mask = _row_tiling(
        rows, cols, gran=gran, max_block_bytes=max_block_bytes)

    psum = pl.pallas_call(
        functools.partial(_reg_kernel, total_rows=rows, tile_rows=tile_rows,
                          needs_mask=needs_mask),
        out_shape=jax.ShapeDtypeStruct((num_blocks, 1), jnp.float32),
        grid_spec=pltpu.PrefetchScalarGridSpec(
            num_scalar_prefetch=0, grid=(num_blocks,),
            in_specs=[pl.BlockSpec((tile_rows, cols), lambda i: (i, 0))],
            out_specs=pl.BlockSpec((1, 1), lambda i: (i, 0),
                                   memory_space=pltpu.MemorySpace.SMEM)),
        compiler_params=pltpu.CompilerParams(
            dimension_semantics=("parallel",),
            vmem_limit_bytes=32 * 1024 * 1024),
    )(p2)
    return jnp.sum(psum)


def reg_loss_sum(reg_params):
    """sum_p sum(p*p)/2 over a list of parameter arrays (no concatenate copy)."""
    if not reg_params:
        return jnp.float32(0.0)
    total = jnp.float32(0.0)
    for p in reg_params:
        total = total + _param_half_sq_sum(p)
    return total


# ----------------------------------------------------------------------------
# Glue: PyTorch-style nearest interpolation (single gather), forward pass
# ----------------------------------------------------------------------------
def nearest_resize_nchw(x, out_h, out_w):
    """F.interpolate(x, size=(out_h, out_w), mode='nearest') for NCHW."""
    N, C, H, W = x.shape
    if (H, W) == (out_h, out_w):
        return x                                     # skip the gather entirely
    ih = jnp.minimum((jnp.arange(out_h) * H) // out_h, H - 1)
    iw = jnp.minimum((jnp.arange(out_w) * W) // out_w, W - 1)
    # Single combined gather: no intermediate (N, C, out_h, W) materialization.
    return x[:, :, ih[:, None], iw[None, :]]


def single_scale_mae_forward(gt, pred, reg_params, weight_decay=1e-4,
                             return_pointwise=True):
    """gt: (N,1,Hg,Wg), pred: (N,1,Hp,Wp), reg_params: list of arrays."""
    # TODO(synk): weight_by_sampling_interval=True / non-unit loss_weight path not
    #             implemented; default (False) path only.
    N, C, Hp, Wp = pred.shape
    gt_res = nearest_resize_nchw(gt, Hp, Wp)         # torch.no_grad() nearest resample

    ae, sum_ae, sum_mask = masked_ae_nchw(gt_res, pred,
                                          return_pointwise=return_pointwise)
    mae_loss = sum_ae / jnp.maximum(sum_mask, 1e-9)

    total_reg_loss = reg_loss_sum(reg_params) * weight_decay
    total_loss = mae_loss + total_reg_loss

    sub_losses = {"00_mae": mae_loss, "01_reg": total_reg_loss}
    pointwise_losses = {}
    if return_pointwise:
        pointwise_losses["0_ae"] = ae
    return total_loss, sub_losses, pointwise_losses


if __name__ == "__main__":
    key = jax.random.PRNGKey(0)
    k_gt, k_pred, k_w1, k_w2 = jax.random.split(key, 4)

    def ref_all(gt, pred):
        gt_res = nearest_resize_nchw(gt, pred.shape[2], pred.shape[3])
        m = (gt_res > 0).astype(jnp.float32)
        ae = jnp.abs(gt_res - pred) * m
        return ae, jnp.sum(ae) / jnp.maximum(jnp.sum(m), 1e-9), jnp.sum(ae), jnp.sum(m)

    # --- main example: gt larger than pred -> exercises nearest resampling -------
    N, C = 2, 1
    Hg, Wg = 24, 24
    Hp, Wp = 16, 16
    gt = jax.random.uniform(k_gt, (N, C, Hg, Wg), jnp.float32, 0.0, 2.0)
    gt = jnp.where(gt > 0.3, gt, 0.0)                # some invalid (==0) pixels
    pred = jax.random.uniform(k_pred, (N, C, Hp, Wp), jnp.float32, 0.0, 2.0)

    # Synthetic "model" parameters selected by get_regularization_parameters
    # (no 'pred' layers, no biases, no bn weights): conv weight + linear weight.
    reg_params = [
        jax.random.normal(k_w1, (8, 4, 3, 3), jnp.float32) * 0.1,   # conv.weight
        jax.random.normal(k_w2, (16, 32), jnp.float32) * 0.1,       # fc.weight
    ]

    total_loss, sub_losses, pointwise_losses = single_scale_mae_forward(
        gt, pred, reg_params, weight_decay=1e-4)
    jax.block_until_ready(total_loss)
    jax.block_until_ready(pointwise_losses["0_ae"])

    ae_ref, mae_ref, _, _ = ref_all(gt, pred)
    reg_ref = sum(jnp.sum(p * p) / 2.0 for p in reg_params) * 1e-4
    assert jnp.allclose(pointwise_losses["0_ae"], ae_ref, atol=1e-5)
    assert jnp.allclose(sub_losses["00_mae"], mae_ref, atol=1e-5)
    assert jnp.allclose(sub_losses["01_reg"], reg_ref, atol=1e-6)
    assert jnp.allclose(total_loss, mae_ref + reg_ref, atol=1e-5)

    # --- natural lane-dense path (Wp % 128 == 0) with a ragged last grid block ---
    Hp2, Wp2 = 36, 128
    gt2 = jax.random.uniform(k_gt, (N, C, 48, 96), jnp.float32, 0.0, 2.0)
    gt2 = jnp.where(gt2 > 0.3, gt2, 0.0)
    pred2 = jax.random.uniform(k_pred, (N, C, Hp2, Wp2), jnp.float32, 0.0, 2.0)
    gt2_res = nearest_resize_nchw(gt2, Hp2, Wp2)
    ae2, s_ae2, s_m2 = masked_ae_nchw(gt2_res, pred2, return_pointwise=True)
    jax.block_until_ready(ae2)
    ae2_ref, _, s_ae2_ref, s_m2_ref = ref_all(gt2, pred2)
    assert jnp.allclose(ae2, ae2_ref, atol=1e-5)
    assert jnp.allclose(s_ae2, s_ae2_ref, rtol=1e-5)
    assert jnp.allclose(s_m2, s_m2_ref, rtol=1e-6)

    # --- sums-only multi-block fallback path (f32) + bf16 inputs ------------------
    Hp3 = Wp3 = 64
    gt3 = jax.random.uniform(k_gt, (N, C, 48, 48), jnp.float32, 0.0, 2.0)
    gt3 = jnp.where(gt3 > 0.3, gt3, 0.0)
    pred3 = jax.random.uniform(k_pred, (N, C, Hp3, Wp3), jnp.float32, 0.0, 2.0)
    gt3_res = nearest_resize_nchw(gt3, Hp3, Wp3)
    _, s_ae3, s_m3 = masked_ae_nchw(gt3_res, pred3, return_pointwise=False)
    jax.block_until_ready(s_ae3)
    _, _, s_ae3_ref, s_m3_ref = ref_all(gt3, pred3)
    assert jnp.allclose(s_ae3, s_ae3_ref, rtol=1e-4)
    assert jnp.allclose(s_m3, s_m3_ref, rtol=1e-6)

    _, s_ae3b, s_m3b = masked_ae_nchw(gt3_res.astype(jnp.bfloat16),
                                      pred3.astype(jnp.bfloat16),
                                      return_pointwise=False)
    jax.block_until_ready(s_ae3b)
    assert jnp.allclose(s_ae3b, s_ae3_ref, rtol=2e-2)   # bf16 inputs, f32 accum
    assert jnp.allclose(s_m3b, s_m3_ref, rtol=1e-6)

    # --- empty reg-param list guard -----------------------------------------------
    assert float(reg_loss_sum([])) == 0.0

    print("KERNEL_OK")
</pallas_src>

<mosaic_0001>
module attributes {stable_mosaic.version = 11 : i64} {
  func.func @_masked_ae_kernel(%arg0: i32, %arg1: memref<1x512xf32, #tpu.memory_space<vmem>>, %arg2: memref<1x512xf32, #tpu.memory_space<vmem>>, %arg3: memref<1x512xf32, #tpu.memory_space<vmem>>, %arg4: memref<1x2xf32, #tpu.memory_space<smem>>) attributes {dimension_semantics = [#tpu.dimension_semantics<parallel>], iteration_bounds = array<i64: 1>, scalar_prefetch = 0 : i64, scratch_operands = 0 : i64, tpu.core_type = #tpu.core_type<tc>, window_params = [{transform_indices = @transform_0, window_bounds = array<i64: 1, 512>}, {transform_indices = @transform_1, window_bounds = array<i64: 1, 512>}, {transform_indices = @transform_2, window_bounds = array<i64: 1, 512>}, {transform_indices = @transform_3, window_bounds = array<i64: 1, 2>}]} {
    %c0 = arith.constant 0 : index
    %c0_0 = arith.constant 0 : index
    %0 = vector.load %arg1[%c0, %c0_0] : memref<1x512xf32, #tpu.memory_space<vmem>>, vector<1x512xf32>
    %c0_1 = arith.constant 0 : index
    %c0_2 = arith.constant 0 : index
    %1 = vector.load %arg2[%c0_1, %c0_2] : memref<1x512xf32, #tpu.memory_space<vmem>>, vector<1x512xf32>
    %cst = arith.constant 0.000000e+00 : f32
    %2 = vector.broadcast %cst : f32 to vector<1x512xf32>
    %3 = arith.cmpf ogt, %0, %2 : vector<1x512xf32>
    %4 = arith.extui %3 : vector<1x512xi1> to vector<1x512xi32>
    %5 = arith.sitofp %4 : vector<1x512xi32> to vector<1x512xf32>
    %6 = arith.subf %0, %1 : vector<1x512xf32>
    %7 = math.absf %6 : vector<1x512xf32>
    %8 = arith.mulf %7, %5 : vector<1x512xf32>
    %c0_3 = arith.constant 0 : index
    %c0_4 = arith.constant 0 : index
    %9 = vector.load %arg3[%c0_3, %c0_4] : memref<1x512xf32, #tpu.memory_space<vmem>>, vector<1x512xf32>
    tpu.vector_store %arg3[%c0_3, %c0_4], %8 {strides = array<i32>} : memref<1x512xf32, #tpu.memory_space<vmem>>, vector<1x512xf32>,
    %10 = vector.shape_cast %8 : vector<1x512xf32> to vector<1x1x512xf32>
    %cst_5 = arith.constant dense<0.000000e+00> : vector<1xf32>
    %11 = vector.multi_reduction <add>, %10, %cst_5 [1, 2] : vector<1x1x512xf32> to vector<1xf32>
    %12 = vector.shape_cast %11 : vector<1xf32> to vector<1x1x1xf32>
    %13 = vector.extract %12[0, 0, 0] : f32 from vector<1x1x1xf32>
    %c0_6 = arith.constant 0 : index
    %c0_7 = arith.constant 0 : index
    %14 = memref.load %arg4[%c0_6, %c0_7] : memref<1x2xf32, #tpu.memory_space<smem>>
    memref.store %13, %arg4[%c0_6, %c0_7] : memref<1x2xf32, #tpu.memory_space<smem>>
    %15 = vector.shape_cast %5 : vector<1x512xf32> to vector<1x1x512xf32>
    %cst_8 = arith.constant dense<0.000000e+00> : vector<1xf32>
    %16 = vector.multi_reduction <add>, %15, %cst_8 [1, 2] : vector<1x1x512xf32> to vector<1xf32>
    %17 = vector.shape_cast %16 : vector<1xf32> to vector<1x1x1xf32>
    %18 = vector.extract %17[0, 0, 0] : f32 from vector<1x1x1xf32>
    %c0_9 = arith.constant 0 : index
    %c1 = arith.constant 1 : index
    %19 = memref.load %arg4[%c0_9, %c1] : memref<1x2xf32, #tpu.memory_space<smem>>
    memref.store %18, %arg4[%c0_9, %c1] : memref<1x2xf32, #tpu.memory_space<smem>>
    return
  }
  func.func @transform_0(%arg0: i32) -> (i32, i32) {
    %c0_i32 = arith.constant 0 : i32
    %c0_i32_0 = arith.constant 0 : i32
    return %arg0, %c0_i32 : i32, i32
  }
  func.func @transform_1(%arg0: i32) -> (i32, i32) {
    %c0_i32 = arith.constant 0 : i32
    %c0_i32_0 = arith.constant 0 : i32
    return %arg0, %c0_i32 : i32, i32
  }
  func.func @transform_2(%arg0: i32) -> (i32, i32) {
    %c0_i32 = arith.constant 0 : i32
    %c0_i32_0 = arith.constant 0 : i32
    return %arg0, %c0_i32 : i32, i32
  }
  func.func @transform_3(%arg0: i32) -> (i32, i32) {
    %c0_i32 = arith.constant 0 : i32
    %c0_i32_0 = arith.constant 0 : i32
    return %arg0, %c0_i32 : i32, i32
  }
}

</mosaic_0001>

<llo_original>
// kernel: tpu_custom_call.1
$region0: #{tpu_custom_call.1}
  #allocation0 [shape = 'u32[]', space=smem, size = 0x4, offset = 0x4, fixed_abs, tag = 'smem constant byte address 0x4 - core index']
  #allocation1 [shape = 'u32[144,128]{1,0:T(1,128)}', space=vmem, size = 0x12000, scoped, tag = 'internal scratch']
  %s0 = inlined_call_operand.hbm [shape: f32[1,512], index: 0, kind: input, shape index: {}]
  %s1 = inlined_call_operand.hbm [shape: f32[1,512], index: 1, kind: input, shape index: {}]
  %s2 = inlined_call_operand.hbm [shape: f32[1,512], index: 2, kind: output, shape index: {0}]
  %s3 = inlined_call_operand.hbm [shape: f32[1,2], index: 3, kind: output, shape index: {1}]
  %4 = xla_tuple %s2, %s3
  %s5 = sld [smem:[#allocation0]]
  $region34: #{tpu_custom_call.1} parent=0
    _
  %s7 = ssub.s32 1, %s5
  %s8 = scalar_select 0, %s7, %s5
  $region1: #{tpu_custom_call.1} parent=0
    #allocation2 [shape = 'u8[2048]{0}', space=vmem, size = 0x800, scoped, tag = 'input window, operand 0, single buffered']
    #allocation3 [shape = 's32[1]{0}', space=sflag, size = 0x4, scoped, tag = 'scoped memory for tpu_custom_call.1']
    #allocation4 [shape = 's32[1]{0}', space=sflag, size = 0x4, scoped, tag = 'scoped memory for tpu_custom_call.1']
    #allocation5 [shape = 's32[1]{0}', space=sflag, size = 0x4, scoped, tag = 'scoped memory for tpu_custom_call.1']
    #allocation6 [shape = 'u8[2048]{0}', space=vmem, size = 0x800, scoped, tag = 'input window, operand 1, single buffered']
    #allocation7 [shape = 's32[1]{0}', space=sflag, size = 0x4, scoped, tag = 'scoped memory for tpu_custom_call.1']
    #allocation8 [shape = 'u8[2048]{0}', space=vmem, size = 0x800, scoped, tag = 'output window, operand 0, single buffered']
    #allocation9 [shape = 'u8[512]{0}', space=smem, size = 0x200, scoped, tag = 'output window, operand 1, single buffered']
    %9 = vsyncpa [#allocation3], 0
    %10 = vsyncpa [#allocation7], 0
    %11 = vsyncpa [#allocation4], 0
    %12 = vsyncpa [#allocation5], 0
    // Predicated region
    $region2: #{tpu_custom_call.1} parent=1 // pred_check
      _
    $region3: #{tpu_custom_call.1} parent=1 // pred_check_branch
      %14 = sbr.rel (0) target = $region5
    $region4: #{tpu_custom_call.1} parent=1 // pred_region
      %s16 = ssub.s32 64, 64
      %17 = vsyncadd [#allocation3], %s16
      %s19 = sshll.u32 [#allocation2], 4
      %s20 = int_to_ptr.vmem [resolvable:$true] %s19
      %22 = dma.hbm_to_vmem [thread:$0]  %s0, 64, %s20, [#allocation3]
    $region5: #{tpu_custom_call.1} parent=1 // pred_fallthru
      _
    // Predicated region
    $region6: #{tpu_custom_call.1} parent=1 // pred_check
      _
    $region7: #{tpu_custom_call.1} parent=1 // pred_check_branch
      %24 = sbr.rel (0) target = $region9
    $region8: #{tpu_custom_call.1} parent=1 // pred_region
      %s26 = ssub.s32 64, 64
      %27 = vsyncadd [#allocation7], %s26
      %s29 = sshll.u32 [#allocation6], 4
      %s30 = int_to_ptr.vmem [resolvable:$true] %s29
      %32 = dma.hbm_to_vmem [thread:$0]  %s1, 64, %s30, [#allocation7]
    $region9: #{tpu_custom_call.1} parent=1 // pred_fallthru
      _
    // Predicated region
    $region10: #{tpu_custom_call.1} parent=1 // pred_check
      _
    $region11: #{tpu_custom_call.1} parent=1 // pred_check_branch
      %34 = sbr.rel (0) target = $region13
    $region12: #{tpu_custom_call.1} parent=1 // pred_region
      %35 = dma.done [#allocation3], 64
    $region13: #{tpu_custom_call.1} parent=1 // pred_fallthru
      _
    // Predicated region
    $region14: #{tpu_custom_call.1} parent=1 // pred_check
      _
    $region15: #{tpu_custom_call.1} parent=1 // pred_check_branch
      %37 = sbr.rel (0) target = $region17
    $region16: #{tpu_custom_call.1} parent=1 // pred_region
      %38 = dma.done [#allocation7], 64
    $region17: #{tpu_custom_call.1} parent=1 // pred_fallthru
      _
    %v39 = vld [vmem:[#allocation2] sm:$0xf]
    %v40 = vld [vmem:[#allocation6] sm:$0xf]
    %vm41 = vcmp.gt.f32.partialorder %v39, 0.0
    %v42 = vsel %vm41, 1, 0
    %v43 = vcvt.s32.f32 %v42
    %v44 = vsub.f32 %v39, %v40
    %v45 = vand.u32 2147483647, %v44
    %v46 = vmul.f32 %v45, %v43
    %v47 = vlaneseq
    %vm48 = vcmp.ge.s32.totalorder %v47, 0
    %vm49 = vcmp.lt.s32.totalorder %v47, 512
    %vm50 = vmand %vm48, %vm49
    %51 = vst.msk [vmem:[#allocation8] sm:$0xf] %vm50, %v46
    %v53 = vlaneseq
    %v54 = vshrl.u32 %v53, 7
    %v55 = vsub.s32 0, %v54
    %v56 = vrot.slane %v46, %v55
    %v57 = vlaneseq
    %v58 = vshrl.u32 %v57, 7
    %v59 = vsub.s32 1, %v58
    %v60 = vrot.slane %v46, %v59
    %v61 = vlaneseq
    %v62 = vshrl.u32 %v61, 7
    %v63 = vsub.s32 2, %v62
    %v64 = vrot.slane %v46, %v63
    %v65 = vlaneseq
    %v66 = vshrl.u32 %v65, 7
    %v67 = vsub.s32 3, %v66
    %v68 = vrot.slane %v46, %v67
    %vm73 = vcmask 1040384
    %v74 = vsel %vm73, %v56, 0.0
    %v75 = vsel %vm73, %v60, 0.0
    %v76 = vadd.f32 %v74, %v75
    %v77 = vsel %vm73, %v64, 0.0
    %v78 = vadd.f32 %v76, %v77
    %v79 = vsel %vm73, %v68, 0.0
    %v80 = vadd.f32 %v78, %v79
    %81 = vadd.xlane.f32.xlu0 %v80
    %v82 = vpop.xlane.xlu0 %81
    %v83 = vrot.slane %v82, 4
    %v84 = vadd.f32 %v82, %v83
    %v85 = vrot.slane %v84, 2
    %v86 = vadd.f32 %v84, %v85
    %v87 = vrot.slane %v86, 1
    %v88 = vadd.f32 %v86, %v87
    %s89 = vtos %v88
    %s90 = scalar_lea.smem [#allocation9], 0
    %91 = sst [smem:[%s90]] %s89
    %v93 = vlaneseq
    %v94 = vshrl.u32 %v93, 7
    %v95 = vsub.s32 0, %v94
    %v96 = vrot.slane %v43, %v95
    %v97 = vlaneseq
    %v98 = vshrl.u32 %v97, 7
    %v99 = vsub.s32 1, %v98
    %v100 = vrot.slane %v43, %v99
    %v101 = vlaneseq
    %v102 = vshrl.u32 %v101, 7
    %v103 = vsub.s32 2, %v102
    %v104 = vrot.slane %v43, %v103
    %v105 = vlaneseq
    %v106 = vshrl.u32 %v105, 7
    %v107 = vsub.s32 3, %v106
    %v108 = vrot.slane %v43, %v107
    %v113 = vsel %vm73, %v96, 0.0
    %v114 = vsel %vm73, %v100, 0.0
    %v115 = vadd.f32 %v113, %v114
    %v116 = vsel %vm73, %v104, 0.0
    %v117 = vadd.f32 %v115, %v116
    %v118 = vsel %vm73, %v108, 0.0
    %v119 = vadd.f32 %v117, %v118
    %120 = vadd.xlane.f32.xlu0 %v119
    %v121 = vpop.xlane.xlu0 %120
    %v122 = vrot.slane %v121, 4
    %v123 = vadd.f32 %v121, %v122
    %v124 = vrot.slane %v123, 2
    %v125 = vadd.f32 %v123, %v124
    %v126 = vrot.slane %v125, 1
    %v127 = vadd.f32 %v125, %v126
    %s128 = vtos %v127
    %s129 = scalar_lea.smem [#allocation9], 1
    %130 = sst [smem:[%s129]] %s128
    // Predicated region
    $region18: #{tpu_custom_call.1} parent=1 // pred_check
      _
    $region19: #{tpu_custom_call.1} parent=1 // pred_check_branch
      %132 = sbr.rel (0) target = $region21
    $region20: #{tpu_custom_call.1} parent=1 // pred_region
      %s134 = ssub.s32 64, 64
      %135 = vsyncadd [#allocation4], %s134
      %s137 = sshll.u32 [#allocation8], 4
      %s138 = int_to_ptr.vmem [resolvable:$true] %s137
      %140 = dma.vmem_to_hbm [thread:$0]  %s138, 64, %s2, [#allocation4]
    $region21: #{tpu_custom_call.1} parent=1 // pred_fallthru
      _
    // Predicated region
    $region22: #{tpu_custom_call.1} parent=1 // pred_check
      _
    $region23: #{tpu_custom_call.1} parent=1 // pred_check_branch
      %142 = sbr.rel (0) target = $region25
    $region24: #{tpu_custom_call.1} parent=1 // pred_region
      %s144 = ssub.s32 16, 16
      %145 = vsyncadd [#allocation5], %s144
      %148 = dma.smem_to_hbm [#allocation9], 16, %s3, [#allocation5]
    $region25: #{tpu_custom_call.1} parent=1 // pred_fallthru
      _
    // Predicated region
    $region26: #{tpu_custom_call.1} parent=1 // pred_check
      _
    $region27: #{tpu_custom_call.1} parent=1 // pred_check_branch
      %150 = sbr.rel (0) target = $region29
    $region28: #{tpu_custom_call.1} parent=1 // pred_region
      %151 = dma.done [#allocation4], 64
    $region29: #{tpu_custom_call.1} parent=1 // pred_fallthru
      _
    // Predicated region
    $region30: #{tpu_custom_call.1} parent=1 // pred_check
      _
    $region31: #{tpu_custom_call.1} parent=1 // pred_check_branch
      %153 = sbr.rel (0) target = $region33
    $region32: #{tpu_custom_call.1} parent=1 // pred_region
      %154 = dma.done [#allocation5], 16
    $region33: #{tpu_custom_call.1} parent=1 // pred_fallthru
      _
    %155 = sfence
    %156 = vsyncpa [#allocation3], 1
    %157 = vsyncpa [#allocation7], 1
    %158 = vsyncpa [#allocation4], 1
    %159 = vsyncpa [#allocation5], 1

</llo_original>
